<compile_context>
chip_gen: v7x
topology: tpu7x:2x2x1
jax: 0.10.0
libtpu: 0.0.40
codegen_flags: <defaults>
</compile_context>

<pallas_src>
import functools

import jax
import jax.numpy as jnp
from jax.experimental import pallas as pl
from jax.experimental.pallas import tpu as pltpu


def _cdiv(a, b):
    return -(-a // b)


def _round_up(x, m):
    return ((x + m - 1) // m) * m


def _gamma_and_step(vmin, vmax, bins, lengthscale):
    step = (float(vmax) - float(vmin)) / (int(bins) - 1)  # mean(diff(centers))
    if lengthscale is None:
        gamma = 1.0 / step            # PyTorch quirk: 1/lengthscale, NOT squared
    else:
        gamma = 1.0 / (float(lengthscale) ** 2)
    return gamma, step


# ----------------------------------------------------------------------------
# Kernels
# ----------------------------------------------------------------------------
def _rbf_rows_kernel(d_ref, o_ref, *, gamma, vmin, step, bins):
    # d_ref: (tm, 1) distances (edges on sublanes); o_ref: (tm, bins).
    j = jax.lax.broadcasted_iota(jnp.int32, (1, bins), 1).astype(jnp.float32)
    centers = vmin + step * j                      # (1, bins) on lanes
    d = d_ref[...].astype(jnp.float32)             # (tm, 1)
    diff = d - centers                             # (tm, bins) VPU broadcast
    # exp in f32 (EUP); cast only at the store (cheap under memory slack).
    o_ref[...] = jnp.exp(-gamma * diff * diff).astype(o_ref.dtype)


def _rbf_cols_kernel(d_ref, o_ref, *, gamma, vmin, step, bins):
    # Lane-dense layout: d_ref: (1, tn) (edges on lanes); o_ref: (bins, tn).
    tn = o_ref.shape[1]
    b = jax.lax.broadcasted_iota(jnp.int32, (bins, tn), 0).astype(jnp.float32)
    centers = vmin + step * b                      # (bins, tn), bins on sublanes
    d = d_ref[...].astype(jnp.float32)             # (1, tn) -> sublane broadcast
    diff = d - centers
    o_ref[...] = jnp.exp(-gamma * diff * diff).astype(o_ref.dtype)


# ----------------------------------------------------------------------------
# Wrappers
# ----------------------------------------------------------------------------
def rbf_expansion(distance, *, vmin=0.0, vmax=8.0, bins=50, lengthscale=None,
                  tile_m=8192, out_dtype=jnp.float32):
    """RBFExpansion.forward: float [N] -> out_dtype [N, bins] (PyTorch layout)."""
    n = int(distance.shape[0])
    bins = int(bins)
    gamma, step = _gamma_and_step(vmin, vmax, bins, lengthscale)

    tile_m = int(tile_m)
    if n <= tile_m:
        if n >= 1024:
            # Ensure grid >= 2 so v7x's two TensorCores both get work
            # (no-op cost on single-TC v5e/v6e at these sizes).
            tm = _round_up(_cdiv(n, 2), 8)
        else:
            tm = n                      # full-extent block (legal for any n)
    else:
        tm = (tile_m // 8) * 8
    grid = (_cdiv(n, tm),)

    d2 = distance.reshape(n, 1).astype(jnp.float32)
    itemsize = jnp.dtype(out_dtype).itemsize

    # VMEM budget (double-buffered, lane-padded to 128) + margin; stays well
    # under v7x's 64 MiB physical / 32 MiB scoped default at the default tile.
    in_block_bytes = tm * 128 * 4
    out_block_bytes = tm * 128 * itemsize
    vmem_limit = int(min(max(2 * (in_block_bytes + out_block_bytes) + (2 << 20),
                             8 << 20), 128 << 20))

    cost = pl.CostEstimate(flops=3 * n * bins,
                           transcendentals=n * bins,
                           bytes_accessed=4 * n + itemsize * n * bins)

    kernel = functools.partial(_rbf_rows_kernel, gamma=gamma, vmin=float(vmin),
                               step=step, bins=bins)
    return pl.pallas_call(
        kernel,
        out_shape=jax.ShapeDtypeStruct((n, bins), out_dtype),
        grid_spec=pltpu.PrefetchScalarGridSpec(
            num_scalar_prefetch=0,
            grid=grid,
            in_specs=[pl.BlockSpec((tm, 1), lambda i: (i, 0))],
            out_specs=pl.BlockSpec((tm, bins), lambda i: (i, 0)),
        ),
        compiler_params=pltpu.CompilerParams(
            dimension_semantics=("parallel",),
            vmem_limit_bytes=vmem_limit,
        ),
        cost_estimate=cost,
    )(d2)


def rbf_expansion_lane_dense(distance, *, vmin=0.0, vmax=8.0, bins=50,
                             lengthscale=None, tile_n=16384,
                             out_dtype=jnp.float32):
    """Lane-dense variant: float [N] -> out_dtype [bins, N] (transposed layout).

    Edges sit on the 128-lane axis: dense input DMA, unmasked 128-wide stores,
    ~8 MiB double-buffered VMEM at the default tile.  Use when the consumer can
    accept [bins, N]; result equals rbf_expansion(...).T.
    """
    n = int(distance.shape[0])
    bins = int(bins)
    gamma, step = _gamma_and_step(vmin, vmax, bins, lengthscale)

    tile_n = int(tile_n)
    if n <= tile_n:
        if n >= 2048:
            tn = _round_up(_cdiv(n, 2), 128)   # grid >= 2 for v7x's 2 TCs
        else:
            tn = n                              # full-extent block
    else:
        tn = (tile_n // 128) * 128
    grid = (_cdiv(n, tn),)

    d_row = distance.reshape(1, n).astype(jnp.float32)
    itemsize = jnp.dtype(out_dtype).itemsize

    in_block_bytes = 8 * tn * 4                         # sublane-padded (1, tn)
    out_block_bytes = _round_up(bins, 8) * tn * itemsize
    vmem_limit = int(min(max(2 * (in_block_bytes + out_block_bytes) + (2 << 20),
                             8 << 20), 128 << 20))

    cost = pl.CostEstimate(flops=3 * n * bins,
                           transcendentals=n * bins,
                           bytes_accessed=4 * n + itemsize * n * bins)

    kernel = functools.partial(_rbf_cols_kernel, gamma=gamma, vmin=float(vmin),
                               step=step, bins=bins)
    return pl.pallas_call(
        kernel,
        out_shape=jax.ShapeDtypeStruct((bins, n), out_dtype),
        grid_spec=pltpu.PrefetchScalarGridSpec(
            num_scalar_prefetch=0,
            grid=grid,
            in_specs=[pl.BlockSpec((1, tn), lambda i: (0, i))],
            out_specs=pl.BlockSpec((bins, tn), lambda i: (0, i)),
        ),
        compiler_params=pltpu.CompilerParams(
            dimension_semantics=("parallel",),
            vmem_limit_bytes=vmem_limit,
        ),
        cost_estimate=cost,
    )(d_row)


# ----------------------------------------------------------------------------
# Reference + self-test
# ----------------------------------------------------------------------------
def _reference(distance, vmin=0.0, vmax=8.0, bins=50, lengthscale=None):
    gamma, _ = _gamma_and_step(vmin, vmax, bins, lengthscale)
    centers = jnp.linspace(vmin, vmax, bins, dtype=jnp.float32)
    return jnp.exp(-gamma * (distance[:, None].astype(jnp.float32)
                             - centers[None, :]) ** 2)


if __name__ == "__main__":
    key = jax.random.PRNGKey(0)
    N, BINS = 300, 50                      # arbitrary edge count (not tile-aligned)
    distance = jax.random.uniform(key, (N,), dtype=jnp.float32,
                                  minval=0.0, maxval=8.0)

    ref = _reference(distance, 0.0, 8.0, BINS, None)

    # Default [N, bins] layout (matches PyTorch forward).
    out = jax.block_until_ready(rbf_expansion(distance, vmin=0.0, vmax=8.0,
                                              bins=BINS, lengthscale=None))
    assert out.shape == (N, BINS), out.shape
    assert jnp.allclose(out, ref, atol=1e-5, rtol=1e-5), "mismatch vs reference"

    # Explicit-lengthscale branch (gamma = 1/ls**2).
    out_ls = jax.block_until_ready(
        rbf_expansion(distance, bins=BINS, lengthscale=0.5))
    ref_ls = _reference(distance, 0.0, 8.0, BINS, 0.5)
    assert jnp.allclose(out_ls, ref_ls, atol=1e-5, rtol=1e-5), "mismatch (ls)"

    # bf16 output path (halves HBM write bytes; exp still f32).
    out_bf16 = jax.block_until_ready(
        rbf_expansion(distance, bins=BINS, out_dtype=jnp.bfloat16))
    assert out_bf16.dtype == jnp.bfloat16
    assert jnp.allclose(out_bf16.astype(jnp.float32), ref,
                        atol=2e-2, rtol=2e-2), "mismatch (bf16)"

    # Lane-dense [bins, N] layout for fused consumers.
    out_t = jax.block_until_ready(rbf_expansion_lane_dense(distance, bins=BINS))
    assert out_t.shape == (BINS, N), out_t.shape
    assert jnp.allclose(out_t, ref.T, atol=1e-5, rtol=1e-5), "mismatch (lane-dense)"

    print("KERNEL_OK")
</pallas_src>

<mosaic_0001>
module attributes {stable_mosaic.version = 11 : i64} {
  func.func @_rbf_rows_kernel(%arg0: i32, %arg1: memref<300x1xf32, #tpu.memory_space<vmem>>, %arg2: memref<300x50xf32, #tpu.memory_space<vmem>>) attributes {dimension_semantics = [#tpu.dimension_semantics<parallel>], iteration_bounds = array<i64: 1>, scalar_prefetch = 0 : i64, scratch_operands = 0 : i64, tpu.core_type = #tpu.core_type<tc>, window_params = [{transform_indices = @transform_0, window_bounds = array<i64: 300, 1>}, {transform_indices = @transform_1, window_bounds = array<i64: 300, 50>}]} {
    %0 = tpu.iota {dimensions = array<i32: 1>} : vector<1x50xi32>
    %1 = arith.sitofp %0 : vector<1x50xi32> to vector<1x50xf32>
    %cst = arith.constant 0.163265303 : f32
    %2 = vector.broadcast %cst : f32 to vector<1x50xf32>
    %3 = arith.mulf %2, %1 : vector<1x50xf32>
    %cst_0 = arith.constant 0.000000e+00 : f32
    %4 = vector.broadcast %cst_0 : f32 to vector<1x50xf32>
    %5 = arith.addf %4, %3 : vector<1x50xf32>
    %c0 = arith.constant 0 : index
    %c0_1 = arith.constant 0 : index
    %6 = vector.load %arg1[%c0, %c0_1] : memref<300x1xf32, #tpu.memory_space<vmem>>, vector<300x1xf32>
    %7 = vector.broadcast %6 : vector<300x1xf32> to vector<300x50xf32>
    %8 = vector.broadcast %5 : vector<1x50xf32> to vector<300x50xf32>
    %9 = arith.subf %7, %8 : vector<300x50xf32>
    %cst_2 = arith.constant -6.125000e+00 : f32
    %10 = vector.broadcast %cst_2 : f32 to vector<300x50xf32>
    %11 = arith.mulf %10, %9 : vector<300x50xf32>
    %12 = arith.mulf %11, %9 : vector<300x50xf32>
    %13 = math.exp %12 : vector<300x50xf32>
    %c0_3 = arith.constant 0 : index
    %c0_4 = arith.constant 0 : index
    %14 = vector.load %arg2[%c0_3, %c0_4] : memref<300x50xf32, #tpu.memory_space<vmem>>, vector<300x50xf32>
    tpu.vector_store %arg2[%c0_3, %c0_4], %13 {strides = array<i32>} : memref<300x50xf32, #tpu.memory_space<vmem>>, vector<300x50xf32>,
    return
  }
  func.func @transform_0(%arg0: i32) -> (i32, i32) {
    %c0_i32 = arith.constant 0 : i32
    %c0_i32_0 = arith.constant 0 : i32
    return %arg0, %c0_i32 : i32, i32
  }
  func.func @transform_1(%arg0: i32) -> (i32, i32) {
    %c0_i32 = arith.constant 0 : i32
    %c0_i32_0 = arith.constant 0 : i32
    return %arg0, %c0_i32 : i32, i32
  }
}

</mosaic_0001>

<llo_original>
// kernel: tpu_custom_call.1
$region0: #{tpu_custom_call.1}
  #allocation0 [shape = 'u32[]', space=smem, size = 0x4, offset = 0x4, fixed_abs, tag = 'smem constant byte address 0x4 - core index']
  #allocation1 [shape = 'u32[144,128]{1,0:T(1,128)}', space=vmem, size = 0x12000, scoped, tag = 'internal scratch']
  %s0 = inlined_call_operand.vmem [shape: f32[300,1], index: 0, kind: input, shape index: {}]
  %s1 = inlined_call_operand.vmem [shape: f32[300,50], index: 1, kind: output, shape index: {}]
  %s2 = sld [smem:[#allocation0]]
  $region14: #{tpu_custom_call.1} parent=0
    _
  %s4 = ssub.s32 1, %s2
  %s5 = scalar_select 0, %s4, %s2
  // Predicated region
  $region2: #{tpu_custom_call.1} parent=0 // pred_check
    _
  $region3: #{tpu_custom_call.1} parent=0 // pred_check_branch
    %7 = sbr.rel (0) target = $region5
  $region4: #{tpu_custom_call.1} parent=0 // pred_region
    _
  $region5: #{tpu_custom_call.1} parent=0 // pred_fallthru
    _
  %v8 = vlaneseq
  %v9 = vand.u32 %v8, 127
  %v10 = vcvt.s32.f32 %v9
  %v11 = vmul.f32 %v10, 0.1632653
  %v12 = vadd.f32 %v11, 0.0
  %v13 = vld [vmem:[%s0] sm:$0xff]
  %v14 = vld [vmem:[%s0 + $0x8] sm:$0xff]
  %v15 = vld [vmem:[%s0 + $0x10] sm:$0xff]
  %v16 = vld [vmem:[%s0 + $0x18] sm:$0xff]
  %v17 = vld [vmem:[%s0 + $0x20] sm:$0xff]
  %v18 = vld [vmem:[%s0 + $0x28] sm:$0xff]
  %v19 = vld [vmem:[%s0 + $0x30] sm:$0xff]
  %v20 = vld [vmem:[%s0 + $0x38] sm:$0xff]
  %v21 = vld [vmem:[%s0 + $0x40] sm:$0xff]
  %v22 = vld [vmem:[%s0 + $0x48] sm:$0xff]
  %v23 = vld [vmem:[%s0 + $0x50] sm:$0xff]
  %v24 = vld [vmem:[%s0 + $0x58] sm:$0xff]
  %v25 = vld [vmem:[%s0 + $0x60] sm:$0xff]
  %v26 = vld [vmem:[%s0 + $0x68] sm:$0xff]
  %v27 = vld [vmem:[%s0 + $0x70] sm:$0xff]
  %v28 = vld [vmem:[%s0 + $0x78] sm:$0xff]
  %v29 = vld [vmem:[%s0 + $0x80] sm:$0xff]
  %v30 = vld [vmem:[%s0 + $0x88] sm:$0xff]
  %v31 = vld [vmem:[%s0 + $0x90] sm:$0xff]
  %v32 = vld [vmem:[%s0 + $0x98] sm:$0xff]
  %v33 = vld [vmem:[%s0 + $0xa0] sm:$0xff]
  %v34 = vld [vmem:[%s0 + $0xa8] sm:$0xff]
  %v35 = vld [vmem:[%s0 + $0xb0] sm:$0xff]
  %v36 = vld [vmem:[%s0 + $0xb8] sm:$0xff]
  %v37 = vld [vmem:[%s0 + $0xc0] sm:$0xff]
  %v38 = vld [vmem:[%s0 + $0xc8] sm:$0xff]
  %v39 = vld [vmem:[%s0 + $0xd0] sm:$0xff]
  %v40 = vld [vmem:[%s0 + $0xd8] sm:$0xff]
  %v41 = vld [vmem:[%s0 + $0xe0] sm:$0xff]
  %v42 = vld [vmem:[%s0 + $0xe8] sm:$0xff]
  %v43 = vld [vmem:[%s0 + $0xf0] sm:$0xff]
  %v44 = vld [vmem:[%s0 + $0xf8] sm:$0xff]
  %v45 = vld [vmem:[%s0 + $0x100] sm:$0xff]
  %v46 = vld [vmem:[%s0 + $0x108] sm:$0xff]
  %v47 = vld [vmem:[%s0 + $0x110] sm:$0xff]
  %v48 = vld [vmem:[%s0 + $0x118] sm:$0xff]
  %v49 = vld [vmem:[%s0 + $0x120] sm:$0xff]
  %v50 = vld [vmem:[%s0 + $0x128] sm:$0xf]
  %52 = vset.pattern.permute.xlu0 0
  %53 = vperm.xlu0 %52, %v13
  %v54 = vpop.permute.xlu0 %53
  %57 = vset.pattern.permute.xlu0 0
  %58 = vperm.xlu0 %57, %v14
  %v59 = vpop.permute.xlu0 %58
  %62 = vset.pattern.permute.xlu0 0
  %63 = vperm.xlu0 %62, %v15
  %v64 = vpop.permute.xlu0 %63
  %67 = vset.pattern.permute.xlu0 0
  %68 = vperm.xlu0 %67, %v16
  %v69 = vpop.permute.xlu0 %68
  %72 = vset.pattern.permute.xlu0 0
  %73 = vperm.xlu0 %72, %v17
  %v74 = vpop.permute.xlu0 %73
  %77 = vset.pattern.permute.xlu0 0
  %78 = vperm.xlu0 %77, %v18
  %v79 = vpop.permute.xlu0 %78
  %82 = vset.pattern.permute.xlu0 0
  %83 = vperm.xlu0 %82, %v19
  %v84 = vpop.permute.xlu0 %83
  %87 = vset.pattern.permute.xlu0 0
  %88 = vperm.xlu0 %87, %v20
  %v89 = vpop.permute.xlu0 %88
  %92 = vset.pattern.permute.xlu0 0
  %93 = vperm.xlu0 %92, %v21
  %v94 = vpop.permute.xlu0 %93
  %97 = vset.pattern.permute.xlu0 0
  %98 = vperm.xlu0 %97, %v22
  %v99 = vpop.permute.xlu0 %98
  %102 = vset.pattern.permute.xlu0 0
  %103 = vperm.xlu0 %102, %v23
  %v104 = vpop.permute.xlu0 %103
  %107 = vset.pattern.permute.xlu0 0
  %108 = vperm.xlu0 %107, %v24
  %v109 = vpop.permute.xlu0 %108
  %112 = vset.pattern.permute.xlu0 0
  %113 = vperm.xlu0 %112, %v25
  %v114 = vpop.permute.xlu0 %113
  %117 = vset.pattern.permute.xlu0 0
  %118 = vperm.xlu0 %117, %v26
  %v119 = vpop.permute.xlu0 %118
  %122 = vset.pattern.permute.xlu0 0
  %123 = vperm.xlu0 %122, %v27
  %v124 = vpop.permute.xlu0 %123
  %127 = vset.pattern.permute.xlu0 0
  %128 = vperm.xlu0 %127, %v28
  %v129 = vpop.permute.xlu0 %128
  %132 = vset.pattern.permute.xlu0 0
  %133 = vperm.xlu0 %132, %v29
  %v134 = vpop.permute.xlu0 %133
  %137 = vset.pattern.permute.xlu0 0
  %138 = vperm.xlu0 %137, %v30
  %v139 = vpop.permute.xlu0 %138
  %142 = vset.pattern.permute.xlu0 0
  %143 = vperm.xlu0 %142, %v31
  %v144 = vpop.permute.xlu0 %143
  %147 = vset.pattern.permute.xlu0 0
  %148 = vperm.xlu0 %147, %v32
  %v149 = vpop.permute.xlu0 %148
  %152 = vset.pattern.permute.xlu0 0
  %153 = vperm.xlu0 %152, %v33
  %v154 = vpop.permute.xlu0 %153
  %157 = vset.pattern.permute.xlu0 0
  %158 = vperm.xlu0 %157, %v34
  %v159 = vpop.permute.xlu0 %158
  %162 = vset.pattern.permute.xlu0 0
  %163 = vperm.xlu0 %162, %v35
  %v164 = vpop.permute.xlu0 %163
  %167 = vset.pattern.permute.xlu0 0
  %168 = vperm.xlu0 %167, %v36
  %v169 = vpop.permute.xlu0 %168
  %172 = vset.pattern.permute.xlu0 0
  %173 = vperm.xlu0 %172, %v37
  %v174 = vpop.permute.xlu0 %173
  %177 = vset.pattern.permute.xlu0 0
  %178 = vperm.xlu0 %177, %v38
  %v179 = vpop.permute.xlu0 %178
  %182 = vset.pattern.permute.xlu0 0
  %183 = vperm.xlu0 %182, %v39
  %v184 = vpop.permute.xlu0 %183
  %187 = vset.pattern.permute.xlu0 0
  %188 = vperm.xlu0 %187, %v40
  %v189 = vpop.permute.xlu0 %188
  %192 = vset.pattern.permute.xlu0 0
  %193 = vperm.xlu0 %192, %v41
  %v194 = vpop.permute.xlu0 %193
  %197 = vset.pattern.permute.xlu0 0
  %198 = vperm.xlu0 %197, %v42
  %v199 = vpop.permute.xlu0 %198
  %202 = vset.pattern.permute.xlu0 0
  %203 = vperm.xlu0 %202, %v43
  %v204 = vpop.permute.xlu0 %203
  %207 = vset.pattern.permute.xlu0 0
  %208 = vperm.xlu0 %207, %v44
  %v209 = vpop.permute.xlu0 %208
  %212 = vset.pattern.permute.xlu0 0
  %213 = vperm.xlu0 %212, %v45
  %v214 = vpop.permute.xlu0 %213
  %217 = vset.pattern.permute.xlu0 0
  %218 = vperm.xlu0 %217, %v46
  %v219 = vpop.permute.xlu0 %218
  %222 = vset.pattern.permute.xlu0 0
  %223 = vperm.xlu0 %222, %v47
  %v224 = vpop.permute.xlu0 %223
  %227 = vset.pattern.permute.xlu0 0
  %228 = vperm.xlu0 %227, %v48
  %v229 = vpop.permute.xlu0 %228
  %232 = vset.pattern.permute.xlu0 0
  %233 = vperm.xlu0 %232, %v49
  %v234 = vpop.permute.xlu0 %233
  %237 = vset.pattern.permute.xlu0 0
  %238 = vperm.xlu0 %237, %v50
  %v239 = vpop.permute.xlu0 %238
  %v241 = vsub.f32 %v54, %v12
  %v242 = vsub.f32 %v59, %v12
  %v243 = vsub.f32 %v64, %v12
  %v244 = vsub.f32 %v69, %v12
  %v245 = vsub.f32 %v74, %v12
  %v246 = vsub.f32 %v79, %v12
  %v247 = vsub.f32 %v84, %v12
  %v248 = vsub.f32 %v89, %v12
  %v249 = vsub.f32 %v94, %v12
  %v250 = vsub.f32 %v99, %v12
  %v251 = vsub.f32 %v104, %v12
  %v252 = vsub.f32 %v109, %v12
  %v253 = vsub.f32 %v114, %v12
  %v254 = vsub.f32 %v119, %v12
  %v255 = vsub.f32 %v124, %v12
  %v256 = vsub.f32 %v129, %v12
  %v257 = vsub.f32 %v134, %v12
  %v258 = vsub.f32 %v139, %v12
  %v259 = vsub.f32 %v144, %v12
  %v260 = vsub.f32 %v149, %v12
  %v261 = vsub.f32 %v154, %v12
  %v262 = vsub.f32 %v159, %v12
  %v263 = vsub.f32 %v164, %v12
  %v264 = vsub.f32 %v169, %v12
  %v265 = vsub.f32 %v174, %v12
  %v266 = vsub.f32 %v179, %v12
  %v267 = vsub.f32 %v184, %v12
  %v268 = vsub.f32 %v189, %v12
  %v269 = vsub.f32 %v194, %v12
  %v270 = vsub.f32 %v199, %v12
  %v271 = vsub.f32 %v204, %v12
  %v272 = vsub.f32 %v209, %v12
  %v273 = vsub.f32 %v214, %v12
  %v274 = vsub.f32 %v219, %v12
  %v275 = vsub.f32 %v224, %v12
  %v276 = vsub.f32 %v229, %v12
  %v277 = vsub.f32 %v234, %v12
  %v278 = vsub.f32 %v239, %v12
  %v279 = vmul.f32 %v241, -6.125
  %v280 = vmul.f32 %v242, -6.125
  %v281 = vmul.f32 %v243, -6.125
  %v282 = vmul.f32 %v244, -6.125
  %v283 = vmul.f32 %v245, -6.125
  %v284 = vmul.f32 %v246, -6.125
  %v285 = vmul.f32 %v247, -6.125
  %v286 = vmul.f32 %v248, -6.125
  %v287 = vmul.f32 %v249, -6.125
  %v288 = vmul.f32 %v250, -6.125
  %v289 = vmul.f32 %v251, -6.125
  %v290 = vmul.f32 %v252, -6.125
  %v291 = vmul.f32 %v253, -6.125
  %v292 = vmul.f32 %v254, -6.125
  %v293 = vmul.f32 %v255, -6.125
  %v294 = vmul.f32 %v256, -6.125
  %v295 = vmul.f32 %v257, -6.125
  %v296 = vmul.f32 %v258, -6.125
  %v297 = vmul.f32 %v259, -6.125
  %v298 = vmul.f32 %v260, -6.125
  %v299 = vmul.f32 %v261, -6.125
  %v300 = vmul.f32 %v262, -6.125
  %v301 = vmul.f32 %v263, -6.125
  %v302 = vmul.f32 %v264, -6.125
  %v303 = vmul.f32 %v265, -6.125
  %v304 = vmul.f32 %v266, -6.125
  %v305 = vmul.f32 %v267, -6.125
  %v306 = vmul.f32 %v268, -6.125
  %v307 = vmul.f32 %v269, -6.125
  %v308 = vmul.f32 %v270, -6.125
  %v309 = vmul.f32 %v271, -6.125
  %v310 = vmul.f32 %v272, -6.125
  %v311 = vmul.f32 %v273, -6.125
  %v312 = vmul.f32 %v274, -6.125
  %v313 = vmul.f32 %v275, -6.125
  %v314 = vmul.f32 %v276, -6.125
  %v315 = vmul.f32 %v277, -6.125
  %v316 = vmul.f32 %v278, -6.125
  %v317 = vmul.f32 %v279, %v241
  %v318 = vmul.f32 %v280, %v242
  %v319 = vmul.f32 %v281, %v243
  %v320 = vmul.f32 %v282, %v244
  %v321 = vmul.f32 %v283, %v245
  %v322 = vmul.f32 %v284, %v246
  %v323 = vmul.f32 %v285, %v247
  %v324 = vmul.f32 %v286, %v248
  %v325 = vmul.f32 %v287, %v249
  %v326 = vmul.f32 %v288, %v250
  %v327 = vmul.f32 %v289, %v251
  %v328 = vmul.f32 %v290, %v252
  %v329 = vmul.f32 %v291, %v253
  %v330 = vmul.f32 %v292, %v254
  %v331 = vmul.f32 %v293, %v255
  %v332 = vmul.f32 %v294, %v256
  %v333 = vmul.f32 %v295, %v257
  %v334 = vmul.f32 %v296, %v258
  %v335 = vmul.f32 %v297, %v259
  %v336 = vmul.f32 %v298, %v260
  %v337 = vmul.f32 %v299, %v261
  %v338 = vmul.f32 %v300, %v262
  %v339 = vmul.f32 %v301, %v263
  %v340 = vmul.f32 %v302, %v264
  %v341 = vmul.f32 %v303, %v265
  %v342 = vmul.f32 %v304, %v266
  %v343 = vmul.f32 %v305, %v267
  %v344 = vmul.f32 %v306, %v268
  %v345 = vmul.f32 %v307, %v269
  %v346 = vmul.f32 %v308, %v270
  %v347 = vmul.f32 %v309, %v271
  %v348 = vmul.f32 %v310, %v272
  %v349 = vmul.f32 %v311, %v273
  %v350 = vmul.f32 %v312, %v274
  %v351 = vmul.f32 %v313, %v275
  %v352 = vmul.f32 %v314, %v276
  %v353 = vmul.f32 %v315, %v277
  %v354 = vmul.f32 %v316, %v278
  %v355 = vmul.f32 %v317, 1.442695
  %v356 = vpow.pop %v355
  %v357 = vmul.f32 %v318, 1.442695
  %v358 = vpow.pop %v357
  %v359 = vmul.f32 %v319, 1.442695
  %v360 = vpow.pop %v359
  %v361 = vmul.f32 %v320, 1.442695
  %v362 = vpow.pop %v361
  %v363 = vmul.f32 %v321, 1.442695
  %v364 = vpow.pop %v363
  %v365 = vmul.f32 %v322, 1.442695
  %v366 = vpow.pop %v365
  %v367 = vmul.f32 %v323, 1.442695
  %v368 = vpow.pop %v367
  %v369 = vmul.f32 %v324, 1.442695
  %v370 = vpow.pop %v369
  %v371 = vmul.f32 %v325, 1.442695
  %v372 = vpow.pop %v371
  %v373 = vmul.f32 %v326, 1.442695
  %v374 = vpow.pop %v373
  %v375 = vmul.f32 %v327, 1.442695
  %v376 = vpow.pop %v375
  %v377 = vmul.f32 %v328, 1.442695
  %v378 = vpow.pop %v377
  %v379 = vmul.f32 %v329, 1.442695
  %v380 = vpow.pop %v379
  %v381 = vmul.f32 %v330, 1.442695
  %v382 = vpow.pop %v381
  %v383 = vmul.f32 %v331, 1.442695
  %v384 = vpow.pop %v383
  %v385 = vmul.f32 %v332, 1.442695
  %v386 = vpow.pop %v385
  %v387 = vmul.f32 %v333, 1.442695
  %v388 = vpow.pop %v387
  %v389 = vmul.f32 %v334, 1.442695
  %v390 = vpow.pop %v389
  %v391 = vmul.f32 %v335, 1.442695
  %v392 = vpow.pop %v391
  %v393 = vmul.f32 %v336, 1.442695
  %v394 = vpow.pop %v393
  %v395 = vmul.f32 %v337, 1.442695
  %v396 = vpow.pop %v395
  %v397 = vmul.f32 %v338, 1.442695
  %v398 = vpow.pop %v397
  %v399 = vmul.f32 %v339, 1.442695
  %v400 = vpow.pop %v399
  %v401 = vmul.f32 %v340, 1.442695
  %v402 = vpow.pop %v401
  %v403 = vmul.f32 %v341, 1.442695
  %v404 = vpow.pop %v403
  %v405 = vmul.f32 %v342, 1.442695
  %v406 = vpow.pop %v405
  %v407 = vmul.f32 %v343, 1.442695
  %v408 = vpow.pop %v407
  %v409 = vmul.f32 %v344, 1.442695
  %v410 = vpow.pop %v409
  %v411 = vmul.f32 %v345, 1.442695
  %v412 = vpow.pop %v411
  %v413 = vmul.f32 %v346, 1.442695
  %v414 = vpow.pop %v413
  %v415 = vmul.f32 %v347, 1.442695
  %v416 = vpow.pop %v415
  %v417 = vmul.f32 %v348, 1.442695
  %v418 = vpow.pop %v417
  %v419 = vmul.f32 %v349, 1.442695
  %v420 = vpow.pop %v419
  %v421 = vmul.f32 %v350, 1.442695
  %v422 = vpow.pop %v421
  %v423 = vmul.f32 %v351, 1.442695
  %v424 = vpow.pop %v423
  %v425 = vmul.f32 %v352, 1.442695
  %v426 = vpow.pop %v425
  %v427 = vmul.f32 %v353, 1.442695
  %v428 = vpow.pop %v427
  %v429 = vmul.f32 %v354, 1.442695
  %v430 = vpow.pop %v429
  %vm431 = vcmask 408576
  %432 = vst.msk [vmem:[%s1] sm:$0xff] %vm431, %v356
  %433 = vst.msk [vmem:[%s1 + $0x8] sm:$0xff] %vm431, %v358
  %434 = vst.msk [vmem:[%s1 + $0x10] sm:$0xff] %vm431, %v360
  %435 = vst.msk [vmem:[%s1 + $0x18] sm:$0xff] %vm431, %v362
  %436 = vst.msk [vmem:[%s1 + $0x20] sm:$0xff] %vm431, %v364
  %437 = vst.msk [vmem:[%s1 + $0x28] sm:$0xff] %vm431, %v366
  %438 = vst.msk [vmem:[%s1 + $0x30] sm:$0xff] %vm431, %v368
  %439 = vst.msk [vmem:[%s1 + $0x38] sm:$0xff] %vm431, %v370
  %440 = vst.msk [vmem:[%s1 + $0x40] sm:$0xff] %vm431, %v372
  %441 = vst.msk [vmem:[%s1 + $0x48] sm:$0xff] %vm431, %v374
  %442 = vst.msk [vmem:[%s1 + $0x50] sm:$0xff] %vm431, %v376
  %443 = vst.msk [vmem:[%s1 + $0x58] sm:$0xff] %vm431, %v378
  %444 = vst.msk [vmem:[%s1 + $0x60] sm:$0xff] %vm431, %v380
  %445 = vst.msk [vmem:[%s1 + $0x68] sm:$0xff] %vm431, %v382
  %446 = vst.msk [vmem:[%s1 + $0x70] sm:$0xff] %vm431, %v384
  %447 = vst.msk [vmem:[%s1 + $0x78] sm:$0xff] %vm431, %v386
  %448 = vst.msk [vmem:[%s1 + $0x80] sm:$0xff] %vm431, %v388
  %449 = vst.msk [vmem:[%s1 + $0x88] sm:$0xff] %vm431, %v390
  %450 = vst.msk [vmem:[%s1 + $0x90] sm:$0xff] %vm431, %v392
  %451 = vst.msk [vmem:[%s1 + $0x98] sm:$0xff] %vm431, %v394
  %452 = vst.msk [vmem:[%s1 + $0xa0] sm:$0xff] %vm431, %v396
  %453 = vst.msk [vmem:[%s1 + $0xa8] sm:$0xff] %vm431, %v398
  %454 = vst.msk [vmem:[%s1 + $0xb0] sm:$0xff] %vm431, %v400
  %455 = vst.msk [vmem:[%s1 + $0xb8] sm:$0xff] %vm431, %v402
  %456 = vst.msk [vmem:[%s1 + $0xc0] sm:$0xff] %vm431, %v404
  %457 = vst.msk [vmem:[%s1 + $0xc8] sm:$0xff] %vm431, %v406
  %458 = vst.msk [vmem:[%s1 + $0xd0] sm:$0xff] %vm431, %v408
  %459 = vst.msk [vmem:[%s1 + $0xd8] sm:$0xff] %vm431, %v410
  %460 = vst.msk [vmem:[%s1 + $0xe0] sm:$0xff] %vm431, %v412
  %461 = vst.msk [vmem:[%s1 + $0xe8] sm:$0xff] %vm431, %v414
  %462 = vst.msk [vmem:[%s1 + $0xf0] sm:$0xff] %vm431, %v416
  %463 = vst.msk [vmem:[%s1 + $0xf8] sm:$0xff] %vm431, %v418
  %464 = vst.msk [vmem:[%s1 + $0x100] sm:$0xff] %vm431, %v420
  %465 = vst.msk [vmem:[%s1 + $0x108] sm:$0xff] %vm431, %v422
  %466 = vst.msk [vmem:[%s1 + $0x110] sm:$0xff] %vm431, %v424
  %467 = vst.msk [vmem:[%s1 + $0x118] sm:$0xff] %vm431, %v426
  %468 = vst.msk [vmem:[%s1 + $0x120] sm:$0xff] %vm431, %v428
  %vm469 = vcmask 404480
  %470 = vst.msk [vmem:[%s1 + $0x128] sm:$0xf] %vm469, %v430
  // Predicated region
  $region6: #{tpu_custom_call.1} parent=0 // pred_check
    _
  $region7: #{tpu_custom_call.1} parent=0 // pred_check_branch
    %472 = sbr.rel (0) target = $region9
  $region8: #{tpu_custom_call.1} parent=0 // pred_region
    _
  $region9: #{tpu_custom_call.1} parent=0 // pred_fallthru
    _
  // Predicated region
  $region10: #{tpu_custom_call.1} parent=0 // pred_check
    _
  $region11: #{tpu_custom_call.1} parent=0 // pred_check_branch
    %474 = sbr.rel (0) target = $region13
  $region12: #{tpu_custom_call.1} parent=0 // pred_region
    _
  $region13: #{tpu_custom_call.1} parent=0 // pred_fallthru
    _

</llo_original>
